<compile_context>
chip_gen: v5e
topology: v5e:2x2
jax: 0.10.0
libtpu: 0.0.40
codegen_flags: <defaults>
</compile_context>

<pallas_src>
import functools
import math
from typing import NamedTuple

import jax
import jax.numpy as jnp
from jax.experimental import pallas as pl
from jax.experimental.pallas import tpu as pltpu


def _round_up(x, m):
    return (x + m - 1) // m * m


def _cdiv(a, b):
    return -(-a // b)


# ------------------------------- kernel -------------------------------------

def _dueling_kernel(x_ref, w_phi_ref, b_phi_ref, w_head_ref, b_head_ref, q_ref,
                    *, n_out, avg_advantage):
    # phi: features = ReLU(x @ W_phi + b_phi)     bf16 MXU, f32 accumulate
    feats = jnp.dot(x_ref[...], w_phi_ref[...],
                    preferred_element_type=jnp.float32)
    feats = jnp.maximum(feats + b_phi_ref[...], 0.0)            # f32 [Bt, F]

    # fused head (one MXU matmul):
    #   cols [0:n_out)  advantage, col n_out value, col n_out+1 mean(advantage)
    #   (only populated when avg_advantage), remaining cols zero padding.
    head = jnp.dot(feats.astype(w_head_ref.dtype), w_head_ref[...],
                   preferred_element_type=jnp.float32)
    head = head + b_head_ref[...]                                # f32 [Bt, Np]

    val = head[:, n_out:n_out + 1]                               # static slice

    if avg_advantage:
        # mean(advantage) computed as an extra matmul column -> static slice.
        red = head[:, n_out + 1:n_out + 2]
    else:
        col = jax.lax.broadcasted_iota(jnp.int32, head.shape, 1)
        red = jnp.max(jnp.where(col < n_out, head, -jnp.inf),
                      axis=1, keepdims=True)

    # q over the first n_out columns = advantage + value - reduce(advantage);
    # padded columns hold don't-care values and are sliced off outside.
    q_ref[...] = (head + val - red).astype(q_ref.dtype)


# --------------------------- parameter prep ---------------------------------

class PreparedParams(NamedTuple):
    w_phi: jax.Array       # [D, F]   bfloat16
    b_phi: jax.Array       # [1, F]   float32
    w_head: jax.Array      # [F, Np]  bfloat16 (adv | value | mean-adv | 0-pad)
    b_head: jax.Array      # [1, Np]  float32
    n_out: int
    avg_advantage: bool


def prepare_params(params, *, avg_advantage=True):
    """One-time fusion + bf16 casts, hoisted out of the per-call hot path."""
    w_phi, b_phi, w_a, b_a, w_v, b_v = params
    D, F = w_phi.shape
    n_out = w_a.shape[1]

    Np = _round_up(n_out + 2, 128)                 # lane-dense fused head width
    w_head = jnp.zeros((F, Np), jnp.float32)
    w_head = w_head.at[:, :n_out].set(w_a.astype(jnp.float32))
    w_head = w_head.at[:, n_out].set(w_v.astype(jnp.float32)[:, 0])
    b_head = jnp.zeros((1, Np), jnp.float32)
    b_head = b_head.at[:, :n_out].set(b_a.astype(jnp.float32).reshape(1, n_out))
    b_head = b_head.at[:, n_out].set(b_v.astype(jnp.float32).reshape(-1)[0])
    if avg_advantage:
        # exact: mean over advantage columns is linear, so it can be a column.
        w_head = w_head.at[:, n_out + 1].set(
            jnp.mean(w_a.astype(jnp.float32), axis=1))
        b_head = b_head.at[:, n_out + 1].set(
            jnp.mean(b_a.astype(jnp.float32)))

    return PreparedParams(
        w_phi=w_phi.astype(jnp.bfloat16),
        b_phi=b_phi.astype(jnp.float32).reshape(1, F),
        w_head=w_head.astype(jnp.bfloat16),
        b_head=b_head,
        n_out=int(n_out),
        avg_advantage=bool(avg_advantage),
    )


# ------------------------------- wrapper ------------------------------------

def dueling_forward(state, prep: PreparedParams, *, block_b=512):
    """state: [B, D] float. Returns q: [B, n_out] float32."""
    B, D = state.shape
    F = prep.w_phi.shape[1]
    Np = prep.w_head.shape[1]
    n_out = prep.n_out

    x_bf = state.astype(jnp.bfloat16)

    # Balanced batch tiling: >= 2 (even) tiles for non-trivial B so both v7x
    # TensorCores get work; padding bounded to < 16 rows per tile.
    # (block_b=512 suits v5e/v6e single-core; sweep {128, 256, 512} if tuning.)
    nt = max(1, _cdiv(B, block_b))
    if B >= 64:
        nt = max(nt, 2)
    if nt > 1 and nt % 2:
        nt += 1
    Bt = _round_up(_cdiv(B, nt), 16)
    Bp = Bt * nt
    if Bp != B:
        x_bf = jnp.pad(x_bf, ((0, Bp - B), (0, 0)))

    flops = 2 * Bp * (D * F + F * Np)
    bytes_accessed = (Bp * D * 2 + D * F * 2 + F * 4 + F * Np * 2 + Np * 4
                      + Bp * Np * 2)

    # VMEM: double-buffered x/q tiles + single-buffered weights + f32 temps.
    vmem_est = (2 * Bt * D * 2 + 2 * Bt * Np * 2
                + D * F * 2 + F * 4 + F * Np * 2 + Np * 4
                + Bt * F * 6 + Bt * Np * 4)
    vmem_bytes = int(min(max(3 * vmem_est, 8 << 20), 40 << 20))

    # Weights never change across grid steps: don't double-buffer them.
    weight_mode = {}
    if hasattr(pl, "Buffered"):
        weight_mode = dict(pipeline_mode=pl.Buffered(1))

    kernel = functools.partial(_dueling_kernel, n_out=n_out,
                               avg_advantage=prep.avg_advantage)

    q_padded = pl.pallas_call(
        kernel,
        out_shape=jax.ShapeDtypeStruct((Bp, Np), jnp.bfloat16),
        grid=(nt,),
        in_specs=[
            pl.BlockSpec((Bt, D), lambda i: (i, 0)),               # x tile
            pl.BlockSpec((D, F), lambda i: (0, 0), **weight_mode),  # W_phi
            pl.BlockSpec((1, F), lambda i: (0, 0), **weight_mode),  # b_phi
            pl.BlockSpec((F, Np), lambda i: (0, 0), **weight_mode),  # fused W
            pl.BlockSpec((1, Np), lambda i: (0, 0), **weight_mode),  # fused b
        ],
        out_specs=pl.BlockSpec((Bt, Np), lambda i: (i, 0)),
        compiler_params=pltpu.CompilerParams(
            dimension_semantics=("parallel",),
            vmem_limit_bytes=vmem_bytes),
        cost_estimate=pl.CostEstimate(flops=flops, transcendentals=0,
                                      bytes_accessed=bytes_accessed),
    )(x_bf, prep.w_phi, prep.b_phi, prep.w_head, prep.b_head)

    # Tiny [B, n_out] slice; cast back to f32 to match the module's interface
    # (the large Bp x Np HBM writeback above stays bf16).
    return q_padded[:B, :n_out].astype(jnp.float32)


def dueling_apply(state, prep: PreparedParams, action=None):
    """Full DuelingNetwork.forward: optional action gather kept as JAX glue."""
    q = dueling_forward(state, prep)
    if action is None:
        return q
    # TODO(synk): action gather (q.gather(1, action)) is plain-JAX glue and is
    # intentionally left outside the Pallas kernel.
    return jnp.squeeze(jnp.take_along_axis(q, action.astype(jnp.int32), axis=1))


# ----------------------------- init + reference -----------------------------

def _xavier_uniform(key, fan_in, fan_out, gain=1.0):
    bound = gain * math.sqrt(6.0 / (fan_in + fan_out))
    return jax.random.uniform(key, (fan_in, fan_out), jnp.float32, -bound, bound)


def _linear_default_bias(key, fan_in, fan_out):
    bound = 1.0 / math.sqrt(fan_in)
    return jax.random.uniform(key, (1, fan_out), jnp.float32, -bound, bound)


def make_params(key, in_dim, n_features, n_output):
    ks = jax.random.split(key, 6)
    w_phi = _xavier_uniform(ks[0], in_dim, n_features)       # phi: Linear+ReLU
    b_phi = _linear_default_bias(ks[1], in_dim, n_features)
    w_a = _xavier_uniform(ks[2], n_features, n_output)        # advantage head
    b_a = _linear_default_bias(ks[3], n_features, n_output)
    w_v = _xavier_uniform(ks[4], n_features, 1)                # value head
    b_v = _linear_default_bias(ks[5], n_features, 1)
    return (w_phi, b_phi, w_a, b_a, w_v, b_v)


def dueling_reference_bf16(state, params, *, avg_advantage=True):
    """Pure-JAX reference using the same bf16-operand / f32-accumulate math."""
    w_phi, b_phi, w_a, b_a, w_v, b_v = params
    xb = state.astype(jnp.bfloat16)
    feats = jnp.dot(xb, w_phi.astype(jnp.bfloat16),
                    preferred_element_type=jnp.float32)
    feats = jnp.maximum(feats + b_phi, 0.0)
    fb = feats.astype(jnp.bfloat16)
    adv = jnp.dot(fb, w_a.astype(jnp.bfloat16),
                  preferred_element_type=jnp.float32) + b_a
    val = jnp.dot(fb, w_v.astype(jnp.bfloat16),
                  preferred_element_type=jnp.float32) + b_v
    q = val + adv
    if avg_advantage:
        q = q - jnp.mean(adv, axis=1, keepdims=True)
    else:
        q = q - jnp.max(adv, axis=1, keepdims=True)
    return q


def dueling_reference_f32(state, params, *, avg_advantage=True):
    w_phi, b_phi, w_a, b_a, w_v, b_v = params
    feats = jnp.maximum(state @ w_phi + b_phi, 0.0)
    adv = feats @ w_a + b_a
    val = feats @ w_v + b_v
    q = val + adv
    if avg_advantage:
        q = q - jnp.mean(adv, axis=1, keepdims=True)
    else:
        q = q - jnp.max(adv, axis=1, keepdims=True)
    return q


if __name__ == "__main__":
    key = jax.random.PRNGKey(0)
    k_x, k_p = jax.random.split(key)

    B, in_dim, n_features, n_output = 8, 32, 32, 8

    state = jax.random.normal(k_x, (B, in_dim), jnp.float32)
    params = make_params(k_p, in_dim, n_features, n_output)

    # ---- avg_advantage=True path ----
    prep_avg = prepare_params(params, avg_advantage=True)
    q = jax.block_until_ready(dueling_forward(state, prep_avg))
    assert q.shape == (B, n_output)

    # check against a reference with matching bf16/f32 arithmetic (the kernel
    # additionally quantizes its big writeback to bf16, hence the tolerance)
    q_ref = dueling_reference_bf16(state, params, avg_advantage=True)
    assert jnp.allclose(q, q_ref, atol=1e-2, rtol=1e-2), (
        float(jnp.max(jnp.abs(q - q_ref))))

    # loose sanity check against the full-f32 PyTorch-equivalent math
    q_f32 = dueling_reference_f32(state, params, avg_advantage=True)
    assert jnp.allclose(q, q_f32, atol=1.5e-1, rtol=1.5e-1)

    # ---- avg_advantage=False (max) path ----
    prep_max = prepare_params(params, avg_advantage=False)
    q_max = jax.block_until_ready(dueling_forward(state, prep_max))
    assert q_max.shape == (B, n_output)
    q_max_ref = dueling_reference_bf16(state, params, avg_advantage=False)
    assert jnp.allclose(q_max, q_max_ref, atol=1e-2, rtol=1e-2)

    # ---- action-gather glue ----
    action = jnp.zeros((B, 1), jnp.int32)
    q_acted = jax.block_until_ready(dueling_apply(state, prep_avg, action))
    assert q_acted.shape == (B,)

    print("KERNEL_OK")
</pallas_src>

<mosaic_0001>
module attributes {stable_mosaic.version = 11 : i64} {
  func.func @_dueling_kernel(%arg0: i32, %arg1: memref<16x32xbf16, #tpu.memory_space<vmem>>, %arg2: memref<32x32xbf16, #tpu.memory_space<vmem>>, %arg3: memref<1x32xf32, #tpu.memory_space<vmem>>, %arg4: memref<32x128xbf16, #tpu.memory_space<vmem>>, %arg5: memref<1x128xf32, #tpu.memory_space<vmem>>, %arg6: memref<16x128xbf16, #tpu.memory_space<vmem>>) attributes {dimension_semantics = [#tpu.dimension_semantics<parallel>], iteration_bounds = array<i64: 1>, scalar_prefetch = 0 : i64, scratch_operands = 0 : i64, tpu.core_type = #tpu.core_type<tc>, window_params = [{transform_indices = @transform_0, window_bounds = array<i64: 16, 32>}, {pipeline_mode = #tpu.pipeline_mode<synchronous>, transform_indices = @transform_1, window_bounds = array<i64: 32, 32>}, {pipeline_mode = #tpu.pipeline_mode<synchronous>, transform_indices = @transform_2, window_bounds = array<i64: 1, 32>}, {pipeline_mode = #tpu.pipeline_mode<synchronous>, transform_indices = @transform_3, window_bounds = array<i64: 32, 128>}, {pipeline_mode = #tpu.pipeline_mode<synchronous>, transform_indices = @transform_4, window_bounds = array<i64: 1, 128>}, {transform_indices = @transform_5, window_bounds = array<i64: 16, 128>}]} {
    %c0 = arith.constant 0 : index
    %c0_0 = arith.constant 0 : index
    %0 = vector.load %arg1[%c0, %c0_0] : memref<16x32xbf16, #tpu.memory_space<vmem>>, vector<16x32xbf16>
    %c0_1 = arith.constant 0 : index
    %c0_2 = arith.constant 0 : index
    %1 = vector.load %arg2[%c0_1, %c0_2] : memref<32x32xbf16, #tpu.memory_space<vmem>>, vector<32x32xbf16>
    %cst = arith.constant dense<0.000000e+00> : vector<16x32xf32>
    %2 = tpu.matmul %0, %1, %cst {dimension_numbers = #tpu.dot_dimension_numbers<[1], [0], [0], [1], [0, 0, 1, 1], [], []>} : vector<16x32xbf16>, vector<32x32xbf16>, vector<16x32xf32> -> vector<16x32xf32>
    %c0_3 = arith.constant 0 : index
    %c0_4 = arith.constant 0 : index
    %3 = vector.load %arg3[%c0_3, %c0_4] : memref<1x32xf32, #tpu.memory_space<vmem>>, vector<1x32xf32>
    %4 = vector.broadcast %3 : vector<1x32xf32> to vector<16x32xf32>
    %5 = arith.addf %2, %4 : vector<16x32xf32>
    %cst_5 = arith.constant 0.000000e+00 : f32
    %6 = vector.broadcast %cst_5 : f32 to vector<16x32xf32>
    %7 = arith.maximumf %5, %6 : vector<16x32xf32>
    %8 = arith.truncf %7 : vector<16x32xf32> to vector<16x32xbf16>
    %c0_6 = arith.constant 0 : index
    %c0_7 = arith.constant 0 : index
    %9 = vector.load %arg4[%c0_6, %c0_7] : memref<32x128xbf16, #tpu.memory_space<vmem>>, vector<32x128xbf16>
    %cst_8 = arith.constant dense<0.000000e+00> : vector<16x128xf32>
    %10 = tpu.matmul %8, %9, %cst_8 {dimension_numbers = #tpu.dot_dimension_numbers<[1], [0], [0], [1], [0, 0, 1, 1], [], []>} : vector<16x32xbf16>, vector<32x128xbf16>, vector<16x128xf32> -> vector<16x128xf32>
    %c0_9 = arith.constant 0 : index
    %c0_10 = arith.constant 0 : index
    %11 = vector.load %arg5[%c0_9, %c0_10] : memref<1x128xf32, #tpu.memory_space<vmem>>, vector<1x128xf32>
    %12 = vector.broadcast %11 : vector<1x128xf32> to vector<16x128xf32>
    %13 = arith.addf %10, %12 : vector<16x128xf32>
    %14 = vector.extract_strided_slice %13 {offsets = [0, 8], sizes = [16, 1], strides = [1, 1]} : vector<16x128xf32> to vector<16x1xf32>
    %15 = vector.extract_strided_slice %13 {offsets = [0, 9], sizes = [16, 1], strides = [1, 1]} : vector<16x128xf32> to vector<16x1xf32>
    %16 = vector.broadcast %14 : vector<16x1xf32> to vector<16x128xf32>
    %17 = arith.addf %13, %16 : vector<16x128xf32>
    %18 = vector.broadcast %15 : vector<16x1xf32> to vector<16x128xf32>
    %19 = arith.subf %17, %18 : vector<16x128xf32>
    %20 = arith.truncf %19 : vector<16x128xf32> to vector<16x128xbf16>
    %c0_11 = arith.constant 0 : index
    %c0_12 = arith.constant 0 : index
    %21 = vector.load %arg6[%c0_11, %c0_12] : memref<16x128xbf16, #tpu.memory_space<vmem>>, vector<16x128xbf16>
    tpu.vector_store %arg6[%c0_11, %c0_12], %20 {strides = array<i32>} : memref<16x128xbf16, #tpu.memory_space<vmem>>, vector<16x128xbf16>,
    return
  }
  func.func @transform_0(%arg0: i32) -> (i32, i32) {
    %c0_i32 = arith.constant 0 : i32
    %c0_i32_0 = arith.constant 0 : i32
    return %arg0, %c0_i32 : i32, i32
  }
  func.func @transform_1(%arg0: i32) -> (i32, i32) {
    %c0_i32 = arith.constant 0 : i32
    %c0_i32_0 = arith.constant 0 : i32
    %c0_i32_1 = arith.constant 0 : i32
    return %c0_i32, %c0_i32_0 : i32, i32
  }
  func.func @transform_2(%arg0: i32) -> (i32, i32) {
    %c0_i32 = arith.constant 0 : i32
    %c0_i32_0 = arith.constant 0 : i32
    %c0_i32_1 = arith.constant 0 : i32
    return %c0_i32, %c0_i32_0 : i32, i32
  }
  func.func @transform_3(%arg0: i32) -> (i32, i32) {
    %c0_i32 = arith.constant 0 : i32
    %c0_i32_0 = arith.constant 0 : i32
    %c0_i32_1 = arith.constant 0 : i32
    return %c0_i32, %c0_i32_0 : i32, i32
  }
  func.func @transform_4(%arg0: i32) -> (i32, i32) {
    %c0_i32 = arith.constant 0 : i32
    %c0_i32_0 = arith.constant 0 : i32
    %c0_i32_1 = arith.constant 0 : i32
    return %c0_i32, %c0_i32_0 : i32, i32
  }
  func.func @transform_5(%arg0: i32) -> (i32, i32) {
    %c0_i32 = arith.constant 0 : i32
    %c0_i32_0 = arith.constant 0 : i32
    return %arg0, %c0_i32 : i32, i32
  }
}

</mosaic_0001>

<llo_original>
// kernel: tpu_custom_call.1
$region0: #{tpu_custom_call.1}
  #allocation0 [shape = 'u32[]', space=smem, size = 0x4, offset = 0x4, fixed_abs, tag = 'smem constant byte address 0x4 - core index']
  #allocation1 [shape = 'u32[72,128]{1,0:T(1,128)}', space=vmem, size = 0x9000, scoped, tag = 'internal scratch']
  %s0 = inlined_call_operand.hbm [shape: bf16[16,32], index: 0, kind: input, shape index: {}]
  %s1 = inlined_call_operand.hbm [shape: bf16[32,32], index: 1, kind: input, shape index: {}]
  %s2 = inlined_call_operand.vmem [shape: f32[1,32], index: 2, kind: input, shape index: {}]
  %s3 = inlined_call_operand.hbm [shape: bf16[32,128], index: 3, kind: input, shape index: {}]
  %s4 = inlined_call_operand.vmem [shape: f32[1,128], index: 4, kind: input, shape index: {}]
  %s5 = inlined_call_operand.hbm [shape: bf16[16,128], index: 5, kind: output, shape index: {}]
  %s6 = sld [smem:[#allocation0]]
  $region42: #{tpu_custom_call.1} parent=0
    _
  %s8 = ssub.s32 1, %s6
  %s9 = scalar_select 0, %s8, %s6
  $region1: #{tpu_custom_call.1} parent=0
    #allocation2 [shape = 'u8[4096]{0}', space=vmem, size = 0x1000, scoped, tag = 'input window, operand 0, single buffered']
    #allocation3 [shape = 's32[1]{0}', space=sflag, size = 0x4, scoped, tag = 'scoped memory for tpu_custom_call.1']
    #allocation4 [shape = 's32[1]{0}', space=sflag, size = 0x4, scoped, tag = 'scoped memory for tpu_custom_call.1']
    #allocation5 [shape = 'u8[8192]{0}', space=vmem, size = 0x2000, scoped, tag = 'input window, operand 1, single buffered']
    #allocation6 [shape = 's32[1]{0}', space=sflag, size = 0x4, scoped, tag = 'scoped memory for tpu_custom_call.1']
    #allocation7 [shape = 'u8[8192]{0}', space=vmem, size = 0x2000, scoped, tag = 'input window, operand 3, single buffered']
    #allocation8 [shape = 'u8[4096]{0}', space=vmem, size = 0x1000, scoped, tag = 'output window, operand 0, single buffered']
    %10 = vsyncpa [#allocation3], 0
    %11 = vsyncpa [#allocation6], 0
    %12 = vsyncpa [#allocation4], 0
    // Predicated region
    $region2: #{tpu_custom_call.1} parent=1 // pred_check
      _
    $region3: #{tpu_custom_call.1} parent=1 // pred_check_branch
      %14 = sbr.rel (0) target = $region5
    $region4: #{tpu_custom_call.1} parent=1 // pred_region
      %16 = vsyncadd [#allocation3], 0
      %s17 = sshll.u32 %s0, 4
      %s18 = int_to_ptr.hbm [resolvable:$true] %s17
      %s19 = sshll.u32 [#allocation2], 4
      %s20 = int_to_ptr.vmem [resolvable:$true] %s19
      %25 = dma.hbm_to_vmem [thread:$0]  %s18, 128, %s20, [#allocation3], 64, 64, 4
    $region5: #{tpu_custom_call.1} parent=1 // pred_fallthru
      _
    // Predicated region
    $region6: #{tpu_custom_call.1} parent=1 // pred_check
      _
    $region7: #{tpu_custom_call.1} parent=1 // pred_check_branch
      %27 = sbr.rel (0) target = $region9
    $region8: #{tpu_custom_call.1} parent=1 // pred_region
      %29 = vsyncadd [#allocation6], 0
      %s30 = sshll.u32 %s1, 4
      %s31 = int_to_ptr.hbm [resolvable:$true] %s30
      %s32 = sshll.u32 [#allocation5], 4
      %s33 = int_to_ptr.vmem [resolvable:$true] %s32
      %38 = dma.hbm_to_vmem [thread:$0]  %s31, 256, %s33, [#allocation6], 64, 64, 4
    $region9: #{tpu_custom_call.1} parent=1 // pred_fallthru
      _
    // Predicated region
    $region10: #{tpu_custom_call.1} parent=1 // pred_check
      _
    $region11: #{tpu_custom_call.1} parent=1 // pred_check_branch
      %40 = sbr.rel (0) target = $region13
    $region12: #{tpu_custom_call.1} parent=1 // pred_region
      _
    $region13: #{tpu_custom_call.1} parent=1 // pred_fallthru
      _
    // Predicated region
    $region14: #{tpu_custom_call.1} parent=1 // pred_check
      _
    $region15: #{tpu_custom_call.1} parent=1 // pred_check_branch
      %42 = sbr.rel (0) target = $region17
    $region16: #{tpu_custom_call.1} parent=1 // pred_region
      %44 = vsyncadd [#allocation6], 0
      %s45 = sshll.u32 %s3, 4
      %s46 = int_to_ptr.hbm [resolvable:$true] %s45
      %s47 = sshll.u32 [#allocation7], 4
      %s48 = int_to_ptr.vmem [resolvable:$true] %s47
      %53 = dma.hbm_to_vmem [thread:$0]  %s46, 256, %s48, [#allocation6], 64, 64, 4
    $region17: #{tpu_custom_call.1} parent=1 // pred_fallthru
      _
    // Predicated region
    $region18: #{tpu_custom_call.1} parent=1 // pred_check
      _
    $region19: #{tpu_custom_call.1} parent=1 // pred_check_branch
      %55 = sbr.rel (0) target = $region21
    $region20: #{tpu_custom_call.1} parent=1 // pred_region
      _
    $region21: #{tpu_custom_call.1} parent=1 // pred_fallthru
      _
    // Predicated region
    $region22: #{tpu_custom_call.1} parent=1 // pred_check
      _
    $region23: #{tpu_custom_call.1} parent=1 // pred_check_branch
      %57 = sbr.rel (0) target = $region25
    $region24: #{tpu_custom_call.1} parent=1 // pred_region
      %59 = dma.done [#allocation3], 128
    $region25: #{tpu_custom_call.1} parent=1 // pred_fallthru
      _
    // Predicated region
    $region26: #{tpu_custom_call.1} parent=1 // pred_check
      _
    $region27: #{tpu_custom_call.1} parent=1 // pred_check_branch
      %61 = sbr.rel (0) target = $region29
    $region28: #{tpu_custom_call.1} parent=1 // pred_region
      %63 = dma.done [#allocation6], 256
    $region29: #{tpu_custom_call.1} parent=1 // pred_fallthru
      _
    // Predicated region
    $region30: #{tpu_custom_call.1} parent=1 // pred_check
      _
    $region31: #{tpu_custom_call.1} parent=1 // pred_check_branch
      %65 = sbr.rel (0) target = $region33
    $region32: #{tpu_custom_call.1} parent=1 // pred_region
      %67 = dma.done [#allocation6], 256
    $region33: #{tpu_custom_call.1} parent=1 // pred_fallthru
      _
    %v69 = vld [vmem:[#allocation2] sm:$0xf]
    %v70 = vld [vmem:[#allocation2 + $0x4] sm:$0xf]
    %v71 = vld [vmem:[#allocation5] sm:$0xf]
    %v72 = vld [vmem:[#allocation5 + $0x4] sm:$0xf]
    %v73 = vld [vmem:[#allocation5 + $0x8] sm:$0xf]
    %v74 = vld [vmem:[#allocation5 + $0xc] sm:$0xf]
    %v75 = vld [vmem:[%s2] sm:$0x1]
    %v77 = vperm.slane %v75, 0
    %v81 = vunpack.c.l.b16 %v69
    %v82 = vunpack.c.l.b16 %v70
    %v83 = vpack.c.b16 %v82, %v81
    %v88 = vunpack.c.l.b16 %v71
    %v89 = vunpack.c.l.b16 %v72
    %v90 = vunpack.c.l.b16 %v73
    %v91 = vunpack.c.l.b16 %v74
    %v92 = vpack.c.b16 %v89, %v88
    %v93 = vpack.c.b16 %v91, %v90
    %vm96 = vcmask 261120
    %v98 = vsel %vm96, %v83, 0
    %100 = vmatpush.bf16.msra.mxu0 0
    %101 = vmatpush.bf16.msra.mxu0 0
    %102 = vmatpush.bf16.msra.mxu0 0
    %103 = vmatpush.bf16.msra.mxu0 0
    %104 = vmatpush.bf16.msra.mxu0 0
    %105 = vmatpush.bf16.msra.mxu0 0
    %106 = vmatpush.bf16.msra.mxu0 %v93
    %107 = vmatpush.bf16.msra.mxu0 %v92
    %108 = vmatmul.bf16.gmra.mxu0 %v98
    %v109 = vpop.f32.mrf.mxu0
    %v110 = vadd.f32 %v77, %v109
    %v111 = vpop.f32.mrf.mxu0
    %v112 = vadd.f32 %v77, %v111
    %113 = vdwg.mxu0
    %v114 = vmax.f32 %v110, 0.0
    %v115 = vmax.f32 %v112, 0.0
    %v116 = vpack.c.bf16 %v115, %v114
    %v117 = vld [vmem:[#allocation7] sm:$0xf]
    %v118 = vld [vmem:[#allocation7 + $0x4] sm:$0xf]
    %v119 = vld [vmem:[#allocation7 + $0x8] sm:$0xf]
    %v120 = vld [vmem:[#allocation7 + $0xc] sm:$0xf]
    %v121 = vld [vmem:[%s4] sm:$0x1]
    %v123 = vperm.slane %v121, 0
    %v129 = vunpack.c.l.b16 %v117
    %v130 = vunpack.c.l.b16 %v118
    %v131 = vunpack.c.l.b16 %v119
    %v132 = vunpack.c.l.b16 %v120
    %v133 = vpack.c.b16 %v130, %v129
    %v134 = vpack.c.b16 %v132, %v131
    %v138 = vsel %vm96, %v116, 0
    %140 = vmatpush.bf16.msra.mxu0 0
    %141 = vmatpush.bf16.msra.mxu0 0
    %142 = vmatpush.bf16.msra.mxu0 0
    %143 = vmatpush.bf16.msra.mxu0 0
    %144 = vmatpush.bf16.msra.mxu0 0
    %145 = vmatpush.bf16.msra.mxu0 0
    %146 = vmatpush.bf16.msra.mxu0 %v134
    %147 = vmatpush.bf16.msra.mxu0 %v133
    %148 = vmatmul.bf16.gmra.mxu0 %v138
    %v149 = vpop.f32.mrf.mxu0
    %v150 = vadd.f32 %v123, %v149
    %v151 = vpop.f32.mrf.mxu0
    %v152 = vadd.f32 %v123, %v151
    %153 = vdwg.mxu0
    %155 = vset.pattern.permute.xlu0 8
    %156 = vperm.xlu0 %155, %v150
    %v157 = vpop.permute.xlu0 %156
    %160 = vset.pattern.permute.xlu0 8
    %161 = vperm.xlu0 %160, %v152
    %v162 = vpop.permute.xlu0 %161
    %v164 = vadd.f32 %v150, %v157
    %v165 = vadd.f32 %v152, %v162
    %166 = vset.pattern.permute.xlu0 9
    %167 = vperm.xlu0 %166, %v150
    %v168 = vpop.permute.xlu0 %167
    %170 = vset.pattern.permute.xlu0 9
    %171 = vperm.xlu0 %170, %v152
    %v172 = vpop.permute.xlu0 %171
    %v174 = vsub.f32 %v164, %v168
    %v175 = vsub.f32 %v165, %v172
    %v176 = vpack.c.bf16 %v174, %v174
    %v177 = vpack.c.bf16 %v175, %v175
    %178 = vst [vmem:[#allocation8] sm:$0xf] %v176
    %179 = vst [vmem:[#allocation8 + $0x4] sm:$0xf] %v177
    // Predicated region
    $region34: #{tpu_custom_call.1} parent=1 // pred_check
      _
    $region35: #{tpu_custom_call.1} parent=1 // pred_check_branch
      %181 = sbr.rel (0) target = $region37
    $region36: #{tpu_custom_call.1} parent=1 // pred_region
      %183 = vsyncadd [#allocation4], 0
      %s184 = sshll.u32 [#allocation8], 4
      %s185 = int_to_ptr.vmem [resolvable:$true] %s184
      %s186 = sshll.u32 %s5, 4
      %s187 = int_to_ptr.hbm [resolvable:$true] %s186
      %192 = dma.vmem_to_hbm [thread:$0]  %s185, 128, %s187, [#allocation4], 64, 64, 4
    $region37: #{tpu_custom_call.1} parent=1 // pred_fallthru
      _
    // Predicated region
    $region38: #{tpu_custom_call.1} parent=1 // pred_check
      _
    $region39: #{tpu_custom_call.1} parent=1 // pred_check_branch
      %194 = sbr.rel (0) target = $region41
    $region40: #{tpu_custom_call.1} parent=1 // pred_region
      %196 = dma.done [#allocation4], 128
    $region41: #{tpu_custom_call.1} parent=1 // pred_fallthru
      _
    %197 = vsyncpa [#allocation3], 1
    %198 = vsyncpa [#allocation6], 1
    %199 = vsyncpa [#allocation4], 1

</llo_original>
